<compile_context>
chip_gen: v7x
topology: tpu7x:2x2x1
jax: 0.10.0
libtpu: 0.0.40
codegen_flags: <defaults>
</compile_context>

<pallas_src>
import functools

import jax
import jax.numpy as jnp
from jax.experimental import pallas as pl
from jax.experimental.pallas import tpu as pltpu

_CUSTOMER_METADATA_NEURON = -3
_HIDDEN = 128                                 # width of the first hidden layer
_LAYER_DIMS = [_HIDDEN, 64, 32, 16, 8]        # hidden widths before the output
_SLAB_ROWS = 5 * _HIDDEN + 8                  # 5 padded weights + 8-row bias block


def _dqn_kernel(idx_ref, w1_hbm, slab_ref, out_ref, gathered, sem):
    """Fused W1 row-gather + 6-layer MLP over one batch tile of TB rows."""
    TB = gathered.shape[0]
    base = pl.program_id(0) * TB

    # ---- gather the TB needed rows of W1 straight from HBM ------------------
    # (one_hot(idx) @ W1 == W1[idx, :], so no one-hot / first matmul is needed)
    @pl.loop(0, TB)
    def _start(i):
        pltpu.make_async_copy(
            w1_hbm.at[idx_ref[base + i]], gathered.at[i], sem).start()

    @pl.loop(0, TB)
    def _wait(i):
        # All row copies have identical size; each wait retires one of them.
        pltpu.make_async_copy(w1_hbm.at[0], gathered.at[0], sem).wait()

    # ---- packed tail parameters (zero-padded to 128 lanes) -------------------
    w2 = slab_ref[0:128, :]
    w3 = slab_ref[128:256, :]
    w4 = slab_ref[256:384, :]
    w5 = slab_ref[384:512, :]
    w6 = slab_ref[512:640, :]
    biases = slab_ref[640:648, :]      # row k = bias of layer k+1 (zero padded)

    # ---- MLP: 128 -> 64 -> 32 -> 16 -> 8 -> num_dcs (ReLU between) -----------
    # Padding columns/rows of the packed weights are zero, so the padded lanes
    # of every activation stay exactly zero and do not perturb the result.
    h = jnp.maximum(gathered[...] + biases[0:1, :], 0.0)
    h = jnp.maximum(
        jnp.dot(h, w2, preferred_element_type=jnp.float32) + biases[1:2, :], 0.0)
    h = jnp.maximum(
        jnp.dot(h, w3, preferred_element_type=jnp.float32) + biases[2:3, :], 0.0)
    h = jnp.maximum(
        jnp.dot(h, w4, preferred_element_type=jnp.float32) + biases[3:4, :], 0.0)
    h = jnp.maximum(
        jnp.dot(h, w5, preferred_element_type=jnp.float32) + biases[4:5, :], 0.0)
    out_ref[...] = (jnp.dot(h, w6, preferred_element_type=jnp.float32)
                    + biases[5:6, :])


def init_params(key, num_customers, num_dcs):
    """PyTorch-style Linear init: U(-1/sqrt(fan_in), 1/sqrt(fan_in)).

    Weights are stored as (in_features, out_features) so each layer is h @ W + b.
    """
    dims = [num_customers] + _LAYER_DIMS + [num_dcs]
    params = []
    for i in range(len(dims) - 1):
        fan_in, fan_out = dims[i], dims[i + 1]
        key, kw, kb = jax.random.split(key, 3)
        bound = 1.0 / (fan_in ** 0.5)
        w = jax.random.uniform(kw, (fan_in, fan_out), jnp.float32, -bound, bound)
        b = jax.random.uniform(kb, (1, fan_out), jnp.float32, -bound, bound)
        params.append((w, b))
    return params


def pack_params(params):
    """Split params into (W1, packed slab).

    W1 keeps its natural (num_customers, 128) shape and stays in HBM (row
    gathered).  W2..W6 are zero-padded to (128, 128) and stacked, followed by
    an (8, 128) bias block (row k = bias of layer k+1, zero-padded to 128
    lanes).  Done once, outside the per-call path.
    """
    (w1, b1), *tail = params
    blocks = []
    for w, _ in tail:                                    # W2 .. W6
        wp = jnp.zeros((_HIDDEN, _HIDDEN), jnp.float32)
        blocks.append(wp.at[: w.shape[0], : w.shape[1]].set(w))
    bias_block = jnp.zeros((8, _HIDDEN), jnp.float32)
    for k, b in enumerate([b1] + [b for _, b in tail]):  # b1 .. b6
        bias_block = bias_block.at[k, : b.shape[-1]].set(b.reshape(-1))
    blocks.append(bias_block)
    slab = jnp.concatenate(blocks, axis=0)               # (648, 128)
    assert slab.shape == (_SLAB_ROWS, _HIDDEN)
    return w1, slab


def _round_up(x, m):
    return (x + m - 1) // m * m


@functools.partial(jax.jit, static_argnames=("num_customers", "num_dcs", "block_b"))
def customer_onehot_dqn(x, w1, slab, *, num_customers, num_dcs, block_b=256):
    """x: (B, state_dim) float32 state vectors; returns (B, num_dcs) Q-values."""
    assert num_dcs <= _HIDDEN, "num_dcs must fit the padded 128-lane output"
    B = x.shape[0]

    # Customer index from the metadata neuron.
    # TODO(synk): out-of-range ids are clamped here for DMA safety; the original
    # module's to_onehot would raise instead of silently handling them.
    idx = (x[:, _CUSTOMER_METADATA_NEURON] - num_dcs).astype(jnp.int32)
    idx = jnp.clip(idx, 0, num_customers - 1)

    # Batch tile: multiple of 8 (f32 sublane); one tile for small batches.
    tb = min(_round_up(B, 8), _round_up(block_b, 8))
    b_pad = _round_up(B, tb)
    idx_pad = jnp.zeros((b_pad,), jnp.int32).at[:B].set(idx)
    grid = (b_pad // tb,)

    cost = pl.CostEstimate(
        flops=2 * b_pad * _HIDDEN * _HIDDEN * 5,
        transcendentals=0,
        bytes_accessed=(b_pad * _HIDDEN * 4        # gathered W1 rows
                        + slab.size * 4            # packed tail params
                        + b_pad * 4                # customer ids
                        + b_pad * _HIDDEN * 4))    # lane-dense output

    out = pl.pallas_call(
        _dqn_kernel,
        out_shape=jax.ShapeDtypeStruct((b_pad, _HIDDEN), jnp.float32),
        grid_spec=pltpu.PrefetchScalarGridSpec(
            num_scalar_prefetch=1,
            grid=grid,
            in_specs=[
                pl.BlockSpec(memory_space=pl.ANY),                      # W1 in HBM
                pl.BlockSpec((_SLAB_ROWS, _HIDDEN), lambda i, ids: (0, 0)),
            ],
            out_specs=pl.BlockSpec((tb, _HIDDEN), lambda i, ids: (i, 0)),
            scratch_shapes=[
                pltpu.VMEM((tb, _HIDDEN), jnp.float32),   # gathered W1 rows
                pltpu.SemaphoreType.DMA,                  # row-gather semaphore
            ],
        ),
        compiler_params=pltpu.CompilerParams(
            dimension_semantics=("arbitrary",)),
        cost_estimate=cost,
    )(idx_pad, w1, slab)

    return out[:B, :num_dcs]


def reference_forward(x, params, num_customers, num_dcs):
    idx = (x[:, _CUSTOMER_METADATA_NEURON] - num_dcs).astype(jnp.int32)
    h = jax.nn.one_hot(idx, num_customers, dtype=jnp.float32)
    for i, (w, b) in enumerate(params):
        h = h @ w + b
        if i != len(params) - 1:
            h = jnp.maximum(h, 0.0)
    return h


if __name__ == "__main__":
    num_customers = 32
    num_dcs = 4
    batch = 8
    state_dim = 5  # x[:, -3] holds (customer_id + num_dcs)

    key = jax.random.PRNGKey(0)
    key, k_ids, k_rest = jax.random.split(key, 3)

    customer_ids = jax.random.randint(k_ids, (batch,), 0, num_customers)
    x = jax.random.normal(k_rest, (batch, state_dim), jnp.float32)
    x = x.at[:, _CUSTOMER_METADATA_NEURON].set(
        (customer_ids + num_dcs).astype(jnp.float32))

    params = init_params(jax.random.PRNGKey(42), num_customers, num_dcs)
    w1, slab = pack_params(params)

    y = customer_onehot_dqn(x, w1, slab,
                            num_customers=num_customers, num_dcs=num_dcs)
    y = jax.block_until_ready(y)

    y_ref = reference_forward(x, params, num_customers, num_dcs)
    assert y.shape == (batch, num_dcs)
    assert jnp.allclose(y, y_ref, atol=1e-5, rtol=1e-5), "mismatch vs reference"

    print("KERNEL_OK")
</pallas_src>

<mosaic_0001>
module attributes {stable_mosaic.version = 11 : i64} {
  func.func @_dqn_kernel(%arg0: i32, %arg1: memref<8xi32, #tpu.memory_space<smem>>, %arg2: memref<32x128xf32, #tpu.memory_space<any>>, %arg3: memref<648x128xf32, #tpu.memory_space<vmem>>, %arg4: memref<8x128xf32, #tpu.memory_space<vmem>>, %arg5: memref<8x128xf32, #tpu.memory_space<vmem>>, %arg6: memref<!tpu.dma_semaphore, #tpu.memory_space<semaphore_mem>>) attributes {dimension_semantics = [#tpu.dimension_semantics<arbitrary>], iteration_bounds = array<i64: 1>, scalar_prefetch = 1 : i64, scratch_operands = 2 : i64, tpu.core_type = #tpu.core_type<tc>, window_params = [{}, {pipeline_mode = #tpu.pipeline_mode<synchronous>, transform_indices = @transform_1, window_bounds = array<i64: 648, 128>}, {transform_indices = @transform_2, window_bounds = array<i64: 8, 128>}]} {
    %c8_i32 = arith.constant 8 : i32
    %0 = arith.muli %arg0, %c8_i32 : i32
    %c0_i32 = arith.constant 0 : i32
    %c8_i32_0 = arith.constant 8 : i32
    %1 = arith.addi %c0_i32, %c8_i32_0 : i32
    %c1_i32 = arith.constant 1 : i32
    scf.for %arg7 = %c0_i32 to %1 step %c1_i32  : i32 {
      %c1_i32_24 = arith.constant 1 : i32
      %44 = arith.muli %arg7, %c1_i32_24 : i32
      %c0_i32_25 = arith.constant 0 : i32
      %45 = arith.addi %c0_i32_25, %44 : i32
      %46 = arith.addi %0, %45 : i32
      %47 = arith.index_cast %46 : i32 to index
      %48 = memref.load %arg1[%47] : memref<8xi32, #tpu.memory_space<smem>>
      %c0_i32_26 = arith.constant 0 : i32
      %49 = tpu.memref_slice %arg2[%48, %c0_i32_26] : memref<32x128xf32, #tpu.memory_space<any>> -> memref<1x128xf32, #tpu.memory_space<any>>
      %50 = tpu.memref_squeeze %49 : memref<1x128xf32, #tpu.memory_space<any>> -> memref<128xf32, #tpu.memory_space<any>>
      %c0_i32_27 = arith.constant 0 : i32
      %51 = tpu.memref_slice %arg5[%45, %c0_i32_27] : memref<8x128xf32, #tpu.memory_space<vmem>> -> memref<1x128xf32, #tpu.memory_space<vmem>>
      %52 = tpu.memref_squeeze %51 : memref<1x128xf32, #tpu.memory_space<vmem>> -> memref<128xf32, #tpu.memory_space<vmem>>
      tpu.enqueue_dma source(%50 : memref<128xf32, #tpu.memory_space<any>>) target(%52 : memref<128xf32, #tpu.memory_space<vmem>>) target_semaphore(%arg6 : memref<!tpu.dma_semaphore, #tpu.memory_space<semaphore_mem>>)
    }
    %c8_i32_1 = arith.constant 8 : i32
    %c0_i32_2 = arith.constant 0 : i32
    %c8_i32_3 = arith.constant 8 : i32
    %2 = arith.addi %c0_i32_2, %c8_i32_3 : i32
    %c1_i32_4 = arith.constant 1 : i32
    scf.for %arg7 = %c0_i32_2 to %2 step %c1_i32_4  : i32 {
      %c0_i32_24 = arith.constant 0 : i32
      %c0_i32_25 = arith.constant 0 : i32
      %c0_i32_26 = arith.constant 0 : i32
      %44 = tpu.memref_slice %arg2[%c0_i32_24, %c0_i32_26] : memref<32x128xf32, #tpu.memory_space<any>> -> memref<1x128xf32, #tpu.memory_space<any>>
      %45 = tpu.memref_squeeze %44 : memref<1x128xf32, #tpu.memory_space<any>> -> memref<128xf32, #tpu.memory_space<any>>
      %c0_i32_27 = arith.constant 0 : i32
      %46 = tpu.memref_slice %arg5[%c0_i32_25, %c0_i32_27] : memref<8x128xf32, #tpu.memory_space<vmem>> -> memref<1x128xf32, #tpu.memory_space<vmem>>
      %47 = tpu.memref_squeeze %46 : memref<1x128xf32, #tpu.memory_space<vmem>> -> memref<128xf32, #tpu.memory_space<vmem>>
      tpu.wait_dma2 semaphore(%arg6 : memref<!tpu.dma_semaphore, #tpu.memory_space<semaphore_mem>>) src(%45 : memref<128xf32, #tpu.memory_space<any>>) dst(%47 : memref<128xf32, #tpu.memory_space<vmem>>)
    }
    %c0 = arith.constant 0 : index
    %c0_5 = arith.constant 0 : index
    %3 = vector.load %arg3[%c0, %c0_5] : memref<648x128xf32, #tpu.memory_space<vmem>>, vector<128x128xf32>
    %c128 = arith.constant 128 : index
    %c0_6 = arith.constant 0 : index
    %4 = vector.load %arg3[%c128, %c0_6] : memref<648x128xf32, #tpu.memory_space<vmem>>, vector<128x128xf32>
    %c256 = arith.constant 256 : index
    %c0_7 = arith.constant 0 : index
    %5 = vector.load %arg3[%c256, %c0_7] : memref<648x128xf32, #tpu.memory_space<vmem>>, vector<128x128xf32>
    %c384 = arith.constant 384 : index
    %c0_8 = arith.constant 0 : index
    %6 = vector.load %arg3[%c384, %c0_8] : memref<648x128xf32, #tpu.memory_space<vmem>>, vector<128x128xf32>
    %c512 = arith.constant 512 : index
    %c0_9 = arith.constant 0 : index
    %7 = vector.load %arg3[%c512, %c0_9] : memref<648x128xf32, #tpu.memory_space<vmem>>, vector<128x128xf32>
    %c640 = arith.constant 640 : index
    %c0_10 = arith.constant 0 : index
    %8 = vector.load %arg3[%c640, %c0_10] : memref<648x128xf32, #tpu.memory_space<vmem>>, vector<8x128xf32>
    %c0_11 = arith.constant 0 : index
    %c0_12 = arith.constant 0 : index
    %9 = vector.load %arg5[%c0_11, %c0_12] : memref<8x128xf32, #tpu.memory_space<vmem>>, vector<8x128xf32>
    %10 = vector.extract_strided_slice %8 {offsets = [0, 0], sizes = [1, 128], strides = [1, 1]} : vector<8x128xf32> to vector<1x128xf32>
    %11 = vector.broadcast %10 : vector<1x128xf32> to vector<8x128xf32>
    %12 = arith.addf %9, %11 : vector<8x128xf32>
    %cst = arith.constant 0.000000e+00 : f32
    %13 = vector.broadcast %cst : f32 to vector<8x128xf32>
    %14 = arith.maximumf %12, %13 : vector<8x128xf32>
    %cst_13 = arith.constant dense<0.000000e+00> : vector<8x128xf32>
    %15 = tpu.matmul %14, %3, %cst_13 {dimension_numbers = #tpu.dot_dimension_numbers<[1], [0], [0], [1], [0, 0, 1, 1], [], []>} : vector<8x128xf32>, vector<128x128xf32>, vector<8x128xf32> -> vector<8x128xf32>
    %16 = vector.extract_strided_slice %8 {offsets = [1, 0], sizes = [1, 128], strides = [1, 1]} : vector<8x128xf32> to vector<1x128xf32>
    %17 = vector.broadcast %16 : vector<1x128xf32> to vector<8x128xf32>
    %18 = arith.addf %15, %17 : vector<8x128xf32>
    %cst_14 = arith.constant 0.000000e+00 : f32
    %19 = vector.broadcast %cst_14 : f32 to vector<8x128xf32>
    %20 = arith.maximumf %18, %19 : vector<8x128xf32>
    %cst_15 = arith.constant dense<0.000000e+00> : vector<8x128xf32>
    %21 = tpu.matmul %20, %4, %cst_15 {dimension_numbers = #tpu.dot_dimension_numbers<[1], [0], [0], [1], [0, 0, 1, 1], [], []>} : vector<8x128xf32>, vector<128x128xf32>, vector<8x128xf32> -> vector<8x128xf32>
    %22 = vector.extract_strided_slice %8 {offsets = [2, 0], sizes = [1, 128], strides = [1, 1]} : vector<8x128xf32> to vector<1x128xf32>
    %23 = vector.broadcast %22 : vector<1x128xf32> to vector<8x128xf32>
    %24 = arith.addf %21, %23 : vector<8x128xf32>
    %cst_16 = arith.constant 0.000000e+00 : f32
    %25 = vector.broadcast %cst_16 : f32 to vector<8x128xf32>
    %26 = arith.maximumf %24, %25 : vector<8x128xf32>
    %cst_17 = arith.constant dense<0.000000e+00> : vector<8x128xf32>
    %27 = tpu.matmul %26, %5, %cst_17 {dimension_numbers = #tpu.dot_dimension_numbers<[1], [0], [0], [1], [0, 0, 1, 1], [], []>} : vector<8x128xf32>, vector<128x128xf32>, vector<8x128xf32> -> vector<8x128xf32>
    %28 = vector.extract_strided_slice %8 {offsets = [3, 0], sizes = [1, 128], strides = [1, 1]} : vector<8x128xf32> to vector<1x128xf32>
    %29 = vector.broadcast %28 : vector<1x128xf32> to vector<8x128xf32>
    %30 = arith.addf %27, %29 : vector<8x128xf32>
    %cst_18 = arith.constant 0.000000e+00 : f32
    %31 = vector.broadcast %cst_18 : f32 to vector<8x128xf32>
    %32 = arith.maximumf %30, %31 : vector<8x128xf32>
    %cst_19 = arith.constant dense<0.000000e+00> : vector<8x128xf32>
    %33 = tpu.matmul %32, %6, %cst_19 {dimension_numbers = #tpu.dot_dimension_numbers<[1], [0], [0], [1], [0, 0, 1, 1], [], []>} : vector<8x128xf32>, vector<128x128xf32>, vector<8x128xf32> -> vector<8x128xf32>
    %34 = vector.extract_strided_slice %8 {offsets = [4, 0], sizes = [1, 128], strides = [1, 1]} : vector<8x128xf32> to vector<1x128xf32>
    %35 = vector.broadcast %34 : vector<1x128xf32> to vector<8x128xf32>
    %36 = arith.addf %33, %35 : vector<8x128xf32>
    %cst_20 = arith.constant 0.000000e+00 : f32
    %37 = vector.broadcast %cst_20 : f32 to vector<8x128xf32>
    %38 = arith.maximumf %36, %37 : vector<8x128xf32>
    %cst_21 = arith.constant dense<0.000000e+00> : vector<8x128xf32>
    %39 = tpu.matmul %38, %7, %cst_21 {dimension_numbers = #tpu.dot_dimension_numbers<[1], [0], [0], [1], [0, 0, 1, 1], [], []>} : vector<8x128xf32>, vector<128x128xf32>, vector<8x128xf32> -> vector<8x128xf32>
    %40 = vector.extract_strided_slice %8 {offsets = [5, 0], sizes = [1, 128], strides = [1, 1]} : vector<8x128xf32> to vector<1x128xf32>
    %41 = vector.broadcast %40 : vector<1x128xf32> to vector<8x128xf32>
    %42 = arith.addf %39, %41 : vector<8x128xf32>
    %c0_22 = arith.constant 0 : index
    %c0_23 = arith.constant 0 : index
    %43 = vector.load %arg4[%c0_22, %c0_23] : memref<8x128xf32, #tpu.memory_space<vmem>>, vector<8x128xf32>
    tpu.vector_store %arg4[%c0_22, %c0_23], %42 {strides = array<i32>} : memref<8x128xf32, #tpu.memory_space<vmem>>, vector<8x128xf32>,
    return
  }
  func.func @transform_1(%arg0: i32, %arg1: memref<8xi32, #tpu.memory_space<smem>>) -> (i32, i32) {
    %c0_i32 = arith.constant 0 : i32
    %c0_i32_0 = arith.constant 0 : i32
    %c0_i32_1 = arith.constant 0 : i32
    return %c0_i32, %c0_i32_0 : i32, i32
  }
  func.func @transform_2(%arg0: i32, %arg1: memref<8xi32, #tpu.memory_space<smem>>) -> (i32, i32) {
    %c0_i32 = arith.constant 0 : i32
    %c0_i32_0 = arith.constant 0 : i32
    return %arg0, %c0_i32 : i32, i32
  }
}

</mosaic_0001>

<llo_original>
// kernel: customer_onehot_dqn.1
$region0: #{customer_onehot_dqn.1}
  #allocation0 [shape = 'u32[]', space=smem, size = 0x4, offset = 0x4, fixed_abs, tag = 'smem constant byte address 0x4 - core index']
  #allocation1 [shape = 'u32[144,128]{1,0:T(1,128)}', space=vmem, size = 0x12000, scoped, tag = 'internal scratch']
  #allocation2 [shape = 'f32[8,128]{1,0:T(8,128)}', space=vmem, size = 0x1000, scoped, tag = 'scratch operand']
  #allocation3 [shape = 's32[1]{0}', space=sflag, size = 0x4, scoped, tag = 'scratch operand']
  #allocation4 [shape = 's32[1]{0}', space=sflag, size = 0x4, scoped, tag = 'scoped memory for customer_onehot_dqn.1']
  #allocation5 [shape = 'u8[512]{0}', space=smem, size = 0x200, scoped, tag = 'prefetched SMEM operand 0']
  #allocation8 [shape = 's32[]', space=sflag, size = 0x4, offset = 0, fixed_abs, tag = 'sflag constant byte address 0x0 - dummy sync flag']
  #allocation9 [shape = 's32[]', space=sflag, size = 0x4, offset = 0, fixed_abs, tag = 'sflag constant byte address 0x0 - dummy sync flag']
  #allocation10 [shape = 'u32[]', space=smem, size = 0x4, offset = 0x44, fixed_abs, tag = 'smem constant byte address 0x44 - assertion arg 0']
  #allocation11 [shape = 'u32[]', space=smem, size = 0x4, offset = 0x48, fixed_abs, tag = 'smem constant byte address 0x48 - assertion arg 1']
  %s0 = inlined_call_operand.vmem [shape: s32[8], index: 0, kind: input, shape index: {}]
  %s1 = inlined_call_operand.hbm [shape: f32[32,128], index: 1, kind: input, shape index: {}]
  %s2 = inlined_call_operand.hbm [shape: f32[648,128], index: 2, kind: input, shape index: {}]
  %s3 = inlined_call_operand.vmem [shape: f32[8,128], index: 3, kind: output, shape index: {}]
  %s4 = sld [smem:[#allocation0]]
  $region36: #{customer_onehot_dqn.1} parent=0
    _
  %s6 = ssub.s32 1, %s4
  %s7 = scalar_select 0, %s6, %s4
  %s8 = sshll.u32 %s0, 4
  %s9 = int_to_ptr.vmem [resolvable:$true] %s8
  %11 = dma.vmem_to_smem %s9, 16, [#allocation5], [#allocation4]
  %12 = dma.done [#allocation4], 16
  %13 = sfence
  $region1: #{customer_onehot_dqn.1} parent=0
    #allocation6 [shape = 'u8[331776]{0}', space=vmem, size = 0x51000, scoped, tag = 'input window, operand 2, single buffered']
    #allocation7 [shape = 's32[1]{0}', space=sflag, size = 0x4, scoped, tag = 'scoped memory for customer_onehot_dqn.1']
    %14 = vsyncpa [#allocation7], 0
    // Predicated region
    $region2: #{customer_onehot_dqn.1} parent=1 // pred_check
      _
    $region3: #{customer_onehot_dqn.1} parent=1 // pred_check_branch
      %16 = sbr.rel (0) target = $region5
    $region4: #{customer_onehot_dqn.1} parent=1 // pred_region
      %s18 = ssub.s32 10368, 10368
      %19 = vsyncadd [#allocation7], %s18
      %s20 = sshll.u32 [#allocation6], 4
      %s21 = int_to_ptr.vmem [resolvable:$true] %s20
      %26 = dma.hbm_to_vmem [thread:$0]  %s2, 10368, %s21, [#allocation7], 128, 128, 8
    $region5: #{customer_onehot_dqn.1} parent=1 // pred_fallthru
      _
    // Predicated region
    $region6: #{customer_onehot_dqn.1} parent=1 // pred_check
      _
    $region7: #{customer_onehot_dqn.1} parent=1 // pred_check_branch
      %28 = sbr.rel (0) target = $region9
    $region8: #{customer_onehot_dqn.1} parent=1 // pred_region
      %29 = dma.done [#allocation7], 10368
    $region9: #{customer_onehot_dqn.1} parent=1 // pred_fallthru
      _
    %s30 = smul.u32 0, 8
    loop: start=0, step=1, limit=8
    $region10: #{customer_onehot_dqn.1} parent=1 // loop_pre_header
      _
    $region11: #{customer_onehot_dqn.1} parent=1 // loop_header
      %s32 = sphi 0, %s36
      %p33 = scmp.ge.s32.totalorder %s32, 8
    $region12: #{customer_onehot_dqn.1} parent=1 // loop_header_branch
      %35 = sbr.rel (%p33) target = $region16
    $region13: #{customer_onehot_dqn.1} parent=1 // loop_body
      %s37 = sadd.s32 %s30, %s32
      %s38 = sld [smem:[#allocation5 + %s37]]
      %s39 = smul.addr %s38, 16
      %s40 = scalar_lea.hbm %s1, %s39
      %s41 = scalar_lea.vmem [#allocation2], %s32
      // Predicated region
      $region17: #{customer_onehot_dqn.1} parent=13 // pred_check
        _
      $region18: #{customer_onehot_dqn.1} parent=13 // pred_check_branch
        %43 = sbr.rel target = $region20
      $region19: #{customer_onehot_dqn.1} parent=13 // pred_region
        %44 = sst [smem:[#allocation10]] [#allocation9]
        %45 = sst [smem:[#allocation11]] [#allocation8]
      $region20: #{customer_onehot_dqn.1} parent=13 // pred_fallthru
        _
      %47 = shalt.err (0)
      %s49 = sshll.u32 %s41, 4
      %s50 = int_to_ptr.vmem [resolvable:$true] %s49
      %52 = dma.hbm_to_vmem [thread:$0]  %s40, 16, %s50, [#allocation3]
    $region14: #{customer_onehot_dqn.1} parent=1 // loop_footer
      %s36 = sadd.s32 1, %s32
    $region15: #{customer_onehot_dqn.1} parent=1 // loop_footer_branch
      %31 = sbr.rel target = $region11
    $region16: #{customer_onehot_dqn.1} parent=1 // loop_exit
      _
    loop: start=0, step=1, limit=8
    $region21: #{customer_onehot_dqn.1} parent=1 // loop_pre_header
      _
    $region22: #{customer_onehot_dqn.1} parent=1 // loop_header
      %s54 = sphi 0, %s58
      %p55 = scmp.ge.s32.totalorder %s54, 8
    $region23: #{customer_onehot_dqn.1} parent=1 // loop_header_branch
      %57 = sbr.rel (%p55) target = $region27
    $region24: #{customer_onehot_dqn.1} parent=1 // loop_body
      %60 = dma.done [#allocation3], 16
    $region25: #{customer_onehot_dqn.1} parent=1 // loop_footer
      %s58 = sadd.s32 1, %s54
    $region26: #{customer_onehot_dqn.1} parent=1 // loop_footer_branch
      %53 = sbr.rel target = $region22
    $region27: #{customer_onehot_dqn.1} parent=1 // loop_exit
      _
    %v61 = vld [vmem:[#allocation6] sm:$0xff]
    %v62 = vld [vmem:[#allocation6 + $0x8] sm:$0xff]
    %v63 = vld [vmem:[#allocation6 + $0x10] sm:$0xff]
    %v64 = vld [vmem:[#allocation6 + $0x18] sm:$0xff]
    %v65 = vld [vmem:[#allocation6 + $0x20] sm:$0xff]
    %v66 = vld [vmem:[#allocation6 + $0x28] sm:$0xff]
    %v67 = vld [vmem:[#allocation6 + $0x30] sm:$0xff]
    %v68 = vld [vmem:[#allocation6 + $0x38] sm:$0xff]
    %v69 = vld [vmem:[#allocation6 + $0x40] sm:$0xff]
    %v70 = vld [vmem:[#allocation6 + $0x48] sm:$0xff]
    %v71 = vld [vmem:[#allocation6 + $0x50] sm:$0xff]
    %v72 = vld [vmem:[#allocation6 + $0x58] sm:$0xff]
    %v73 = vld [vmem:[#allocation6 + $0x60] sm:$0xff]
    %v74 = vld [vmem:[#allocation6 + $0x68] sm:$0xff]
    %v75 = vld [vmem:[#allocation6 + $0x70] sm:$0xff]
    %v76 = vld [vmem:[#allocation6 + $0x78] sm:$0xff]
    %v77 = vld [vmem:[#allocation6 + $0x80] sm:$0xff]
    %v78 = vld [vmem:[#allocation6 + $0x88] sm:$0xff]
    %v79 = vld [vmem:[#allocation6 + $0x90] sm:$0xff]
    %v80 = vld [vmem:[#allocation6 + $0x98] sm:$0xff]
    %v81 = vld [vmem:[#allocation6 + $0xa0] sm:$0xff]
    %v82 = vld [vmem:[#allocation6 + $0xa8] sm:$0xff]
    %v83 = vld [vmem:[#allocation6 + $0xb0] sm:$0xff]
    %v84 = vld [vmem:[#allocation6 + $0xb8] sm:$0xff]
    %v85 = vld [vmem:[#allocation6 + $0xc0] sm:$0xff]
    %v86 = vld [vmem:[#allocation6 + $0xc8] sm:$0xff]
    %v87 = vld [vmem:[#allocation6 + $0xd0] sm:$0xff]
    %v88 = vld [vmem:[#allocation6 + $0xd8] sm:$0xff]
    %v89 = vld [vmem:[#allocation6 + $0xe0] sm:$0xff]
    %v90 = vld [vmem:[#allocation6 + $0xe8] sm:$0xff]
    %v91 = vld [vmem:[#allocation6 + $0xf0] sm:$0xff]
    %v92 = vld [vmem:[#allocation6 + $0xf8] sm:$0xff]
    %v93 = vld [vmem:[#allocation6 + $0x100] sm:$0xff]
    %v94 = vld [vmem:[#allocation6 + $0x108] sm:$0xff]
    %v95 = vld [vmem:[#allocation6 + $0x110] sm:$0xff]
    %v96 = vld [vmem:[#allocation6 + $0x118] sm:$0xff]
    %v97 = vld [vmem:[#allocation6 + $0x120] sm:$0xff]
    %v98 = vld [vmem:[#allocation6 + $0x128] sm:$0xff]
    %v99 = vld [vmem:[#allocation6 + $0x130] sm:$0xff]
    %v100 = vld [vmem:[#allocation6 + $0x138] sm:$0xff]
    %v101 = vld [vmem:[#allocation6 + $0x140] sm:$0xff]
    %v102 = vld [vmem:[#allocation6 + $0x148] sm:$0xff]
    %v103 = vld [vmem:[#allocation6 + $0x150] sm:$0xff]
    %v104 = vld [vmem:[#allocation6 + $0x158] sm:$0xff]
    %v105 = vld [vmem:[#allocation6 + $0x160] sm:$0xff]
    %v106 = vld [vmem:[#allocation6 + $0x168] sm:$0xff]
    %v107 = vld [vmem:[#allocation6 + $0x170] sm:$0xff]
    %v108 = vld [vmem:[#allocation6 + $0x178] sm:$0xff]
    %v109 = vld [vmem:[#allocation6 + $0x180] sm:$0xff]
    %v110 = vld [vmem:[#allocation6 + $0x188] sm:$0xff]
    %v111 = vld [vmem:[#allocation6 + $0x190] sm:$0xff]
    %v112 = vld [vmem:[#allocation6 + $0x198] sm:$0xff]
    %v113 = vld [vmem:[#allocation6 + $0x1a0] sm:$0xff]
    %v114 = vld [vmem:[#allocation6 + $0x1a8] sm:$0xff]
    %v115 = vld [vmem:[#allocation6 + $0x1b0] sm:$0xff]
    %v116 = vld [vmem:[#allocation6 + $0x1b8] sm:$0xff]
    %v117 = vld [vmem:[#allocation6 + $0x1c0] sm:$0xff]
    %v118 = vld [vmem:[#allocation6 + $0x1c8] sm:$0xff]
    %v119 = vld [vmem:[#allocation6 + $0x1d0] sm:$0xff]
    %v120 = vld [vmem:[#allocation6 + $0x1d8] sm:$0xff]
    %v121 = vld [vmem:[#allocation6 + $0x1e0] sm:$0xff]
    %v122 = vld [vmem:[#allocation6 + $0x1e8] sm:$0xff]
    %v123 = vld [vmem:[#allocation6 + $0x1f0] sm:$0xff]
    %v124 = vld [vmem:[#allocation6 + $0x1f8] sm:$0xff]
    %v125 = vld [vmem:[#allocation6 + $0x200] sm:$0xff]
    %v126 = vld [vmem:[#allocation6 + $0x208] sm:$0xff]
    %v127 = vld [vmem:[#allocation6 + $0x210] sm:$0xff]
    %v128 = vld [vmem:[#allocation6 + $0x218] sm:$0xff]
    %v129 = vld [vmem:[#allocation6 + $0x220] sm:$0xff]
    %v130 = vld [vmem:[#allocation6 + $0x228] sm:$0xff]
    %v131 = vld [vmem:[#allocation6 + $0x230] sm:$0xff]
    %v132 = vld [vmem:[#allocation6 + $0x238] sm:$0xff]
    %v133 = vld [vmem:[#allocation6 + $0x240] sm:$0xff]
    %v134 = vld [vmem:[#allocation6 + $0x248] sm:$0xff]
    %v135 = vld [vmem:[#allocation6 + $0x250] sm:$0xff]
    %v136 = vld [vmem:[#allocation6 + $0x258] sm:$0xff]
    %v137 = vld [vmem:[#allocation6 + $0x260] sm:$0xff]
    %v138 = vld [vmem:[#allocation6 + $0x268] sm:$0xff]
    %v139 = vld [vmem:[#allocation6 + $0x270] sm:$0xff]
    %v140 = vld [vmem:[#allocation6 + $0x278] sm:$0xff]
    %v141 = vld [vmem:[#allocation6 + $0x280] sm:$0xff]
    %v142 = vld [vmem:[#allocation2] sm:$0xff]
    %v143 = vlaneseq
    %v144 = vshrl.u32 %v143, 7
    %v145 = vsub.s32 0, %v144
    %v146 = vrot.slane %v141, %v145
    %v147 = vadd.f32 %v142, %v146
    %v148 = vmax.f32 %v147, 0.0
    %v149 = vlaneseq
    %v150 = vshrl.u32 %v149, 7
    %v151 = vsub.s32 1, %v150
    %v152 = vrot.slane %v141, %v151
    %153 = vmatprep.subr.mxu0 0.0
    %154 = vmatpush1.msra.mxu0 %v61
    %155 = vmatprep.subr.mxu0 0.0
    %156 = vmatpush1.msra.mxu0 %v62
    %157 = vmatprep.subr.mxu0 0.0
    %158 = vmatpush1.msra.mxu0 %v63
    %159 = vmatprep.subr.mxu0 0.0
    %160 = vmatpush1.msra.mxu0 %v64
    %161 = vmatprep.subr.mxu0 0.0
    %162 = vmatpush1.msra.mxu0 %v65
    %163 = vmatprep.subr.mxu0 0.0
    %164 = vmatpush1.msra.mxu0 %v66
    %165 = vmatprep.subr.mxu0 0.0
    %166 = vmatpush1.msra.mxu0 %v67
    %167 = vmatprep.subr.mxu0 0.0
    %168 = vmatpush1.msra.mxu0 %v68
    %169 = vmatprep.subr.mxu0 0.0
    %170 = vmatpush1.msra.mxu0 %v69
    %171 = vmatprep.subr.mxu0 0.0
    %172 = vmatpush1.msra.mxu0 %v70
    %173 = vmatprep.subr.mxu0 0.0
    %174 = vmatpush1.msra.mxu0 %v71
    %175 = vmatprep.subr.mxu0 0.0
    %176 = vmatpush1.msra.mxu0 %v72
    %177 = vmatprep.subr.mxu0 0.0
    %178 = vmatpush1.msra.mxu0 %v73
    %179 = vmatprep.subr.mxu0 0.0
    %180 = vmatpush1.msra.mxu0 %v74
    %181 = vmatprep.subr.mxu0 0.0
    %182 = vmatpush1.msra.mxu0 %v75
    %183 = vmatprep.subr.mxu0 0.0
    %184 = vmatpush1.msra.mxu0 %v76
    %185 = vmatprep.subr.mxu0 0.0
    %186 = vmatpush1.msra.mxu0 0.0
    %187 = vmatprep.subr.mxu0 0.0
    %188 = vmatpush1.msra.mxu0 0.0
    %189 = vmatprep.subr.mxu0 0.0
    %190 = vmatpush1.msra.mxu0 0.0
    %191 = vmatprep.subr.mxu0 0.0
    %192 = vmatpush1.msra.mxu0 0.0
    %193 = vmatprep.subr.mxu0 0.0
    %194 = vmatpush1.msra.mxu0 0.0
    %195 = vmatprep.subr.mxu0 0.0
    %196 = vmatpush1.msra.mxu0 0.0
    %197 = vmatprep.subr.mxu0 0.0
    %198 = vmatpush1.msra.mxu0 0.0
    %199 = vmatprep.subr.mxu0 0.0
    %200 = vmatpush1.msra.mxu0 0.0
    %201 = vmatprep.subr.mxu0 0.0
    %202 = vmatpush1.msra.mxu0 0.0
    %203 = vmatprep.subr.mxu0 0.0
    %204 = vmatpush1.msra.mxu0 0.0
    %205 = vmatprep.subr.mxu0 0.0
    %206 = vmatpush1.msra.mxu0 0.0
    %207 = vmatprep.subr.mxu0 0.0
    %208 = vmatpush1.msra.mxu0 0.0
    %209 = vmatprep.subr.mxu0 0.0
    %210 = vmatpush1.msra.mxu0 0.0
    %211 = vmatprep.subr.mxu0 0.0
    %212 = vmatpush1.msra.mxu0 0.0
    %213 = vmatprep.subr.mxu0 0.0
    %214 = vmatpush1.msra.mxu0 0.0
    %215 = vmatprep.subr.mxu0 0.0
    %216 = vmatpush1.msra.mxu0 0.0
    %217 = vmatprep.mubr.f32.mxu0 0.0
    %218 = vmatmul.mubr.f32.gmra.mrb[0].mxu0 %v148
    %v219 = vpop.f32.mrb[0].mxu0
    %v220 = vadd.f32 %v152, %v219
    %v221 = vpop.f32.mrb[0].mxu0
    %222 = vdwg.mxu0
    %v223 = vmax.f32 %v220, 0.0
    %v224 = vlaneseq
    %v225 = vshrl.u32 %v224, 7
    %v226 = vsub.s32 2, %v225
    %v227 = vrot.slane %v141, %v226
    %228 = vmatprep.subr.mxu0 0.0
    %229 = vmatpush1.msra.mxu0 %v77
    %230 = vmatprep.subr.mxu0 0.0
    %231 = vmatpush1.msra.mxu0 %v78
    %232 = vmatprep.subr.mxu0 0.0
    %233 = vmatpush1.msra.mxu0 %v79
    %234 = vmatprep.subr.mxu0 0.0
    %235 = vmatpush1.msra.mxu0 %v80
    %236 = vmatprep.subr.mxu0 0.0
    %237 = vmatpush1.msra.mxu0 %v81
    %238 = vmatprep.subr.mxu0 0.0
    %239 = vmatpush1.msra.mxu0 %v82
    %240 = vmatprep.subr.mxu0 0.0
    %241 = vmatpush1.msra.mxu0 %v83
    %242 = vmatprep.subr.mxu0 0.0
    %243 = vmatpush1.msra.mxu0 %v84
    %244 = vmatprep.subr.mxu0 0.0
    %245 = vmatpush1.msra.mxu0 %v85
    %246 = vmatprep.subr.mxu0 0.0
    %247 = vmatpush1.msra.mxu0 %v86
    %248 = vmatprep.subr.mxu0 0.0
    %249 = vmatpush1.msra.mxu0 %v87
    %250 = vmatprep.subr.mxu0 0.0
    %251 = vmatpush1.msra.mxu0 %v88
    %252 = vmatprep.subr.mxu0 0.0
    %253 = vmatpush1.msra.mxu0 %v89
    %254 = vmatprep.subr.mxu0 0.0
    %255 = vmatpush1.msra.mxu0 %v90
    %256 = vmatprep.subr.mxu0 0.0
    %257 = vmatpush1.msra.mxu0 %v91
    %258 = vmatprep.subr.mxu0 0.0
    %259 = vmatpush1.msra.mxu0 %v92
    %260 = vmatprep.subr.mxu0 0.0
    %261 = vmatpush1.msra.mxu0 0.0
    %262 = vmatprep.subr.mxu0 0.0
    %263 = vmatpush1.msra.mxu0 0.0
    %264 = vmatprep.subr.mxu0 0.0
    %265 = vmatpush1.msra.mxu0 0.0
    %266 = vmatprep.subr.mxu0 0.0
    %267 = vmatpush1.msra.mxu0 0.0
    %268 = vmatprep.subr.mxu0 0.0
    %269 = vmatpush1.msra.mxu0 0.0
    %270 = vmatprep.subr.mxu0 0.0
    %271 = vmatpush1.msra.mxu0 0.0
    %272 = vmatprep.subr.mxu0 0.0
    %273 = vmatpush1.msra.mxu0 0.0
    %274 = vmatprep.subr.mxu0 0.0
    %275 = vmatpush1.msra.mxu0 0.0
    %276 = vmatprep.subr.mxu0 0.0
    %277 = vmatpush1.msra.mxu0 0.0
    %278 = vmatprep.subr.mxu0 0.0
    %279 = vmatpush1.msra.mxu0 0.0
    %280 = vmatprep.subr.mxu0 0.0
    %281 = vmatpush1.msra.mxu0 0.0
    %282 = vmatprep.subr.mxu0 0.0
    %283 = vmatpush1.msra.mxu0 0.0
    %284 = vmatprep.subr.mxu0 0.0
    %285 = vmatpush1.msra.mxu0 0.0
    %286 = vmatprep.subr.mxu0 0.0
    %287 = vmatpush1.msra.mxu0 0.0
    %288 = vmatprep.subr.mxu0 0.0
    %289 = vmatpush1.msra.mxu0 0.0
    %290 = vmatprep.subr.mxu0 0.0
    %291 = vmatpush1.msra.mxu0 0.0
    %292 = vmatprep.mubr.f32.mxu0 0.0
    %293 = vmatmul.mubr.f32.gmra.mrb[0].mxu0 %v223
    %v294 = vpop.f32.mrb[0].mxu0
    %v295 = vadd.f32 %v227, %v294
    %v296 = vpop.f32.mrb[0].mxu0
    %297 = vdwg.mxu0
    %v298 = vmax.f32 %v295, 0.0
    %v299 = vlaneseq
    %v300 = vshrl.u32 %v299, 7
    %v301 = vsub.s32 3, %v300
    %v302 = vrot.slane %v141, %v301
    %303 = vmatprep.subr.mxu0 0.0
    %304 = vmatpush1.msra.mxu0 %v93
    %305 = vmatprep.subr.mxu0 0.0
    %306 = vmatpush1.msra.mxu0 %v94
    %307 = vmatprep.subr.mxu0 0.0
    %308 = vmatpush1.msra.mxu0 %v95
    %309 = vmatprep.subr.mxu0 0.0
    %310 = vmatpush1.msra.mxu0 %v96
    %311 = vmatprep.subr.mxu0 0.0
    %312 = vmatpush1.msra.mxu0 %v97
    %313 = vmatprep.subr.mxu0 0.0
    %314 = vmatpush1.msra.mxu0 %v98
    %315 = vmatprep.subr.mxu0 0.0
    %316 = vmatpush1.msra.mxu0 %v99
    %317 = vmatprep.subr.mxu0 0.0
    %318 = vmatpush1.msra.mxu0 %v100
    %319 = vmatprep.subr.mxu0 0.0
    %320 = vmatpush1.msra.mxu0 %v101
    %321 = vmatprep.subr.mxu0 0.0
    %322 = vmatpush1.msra.mxu0 %v102
    %323 = vmatprep.subr.mxu0 0.0
    %324 = vmatpush1.msra.mxu0 %v103
    %325 = vmatprep.subr.mxu0 0.0
    %326 = vmatpush1.msra.mxu0 %v104
    %327 = vmatprep.subr.mxu0 0.0
    %328 = vmatpush1.msra.mxu0 %v105
    %329 = vmatprep.subr.mxu0 0.0
    %330 = vmatpush1.msra.mxu0 %v106
    %331 = vmatprep.subr.mxu0 0.0
    %332 = vmatpush1.msra.mxu0 %v107
    %333 = vmatprep.subr.mxu0 0.0
    %334 = vmatpush1.msra.mxu0 %v108
    %335 = vmatprep.subr.mxu0 0.0
    %336 = vmatpush1.msra.mxu0 0.0
    %337 = vmatprep.subr.mxu0 0.0
    %338 = vmatpush1.msra.mxu0 0.0
    %339 = vmatprep.subr.mxu0 0.0
    %340 = vmatpush1.msra.mxu0 0.0
    %341 = vmatprep.subr.mxu0 0.0
    %342 = vmatpush1.msra.mxu0 0.0
    %343 = vmatprep.subr.mxu0 0.0
    %344 = vmatpush1.msra.mxu0 0.0
    %345 = vmatprep.subr.mxu0 0.0
    %346 = vmatpush1.msra.mxu0 0.0
    %347 = vmatprep.subr.mxu0 0.0
    %348 = vmatpush1.msra.mxu0 0.0
    %349 = vmatprep.subr.mxu0 0.0
    %350 = vmatpush1.msra.mxu0 0.0
    %351 = vmatprep.subr.mxu0 0.0
    %352 = vmatpush1.msra.mxu0 0.0
    %353 = vmatprep.subr.mxu0 0.0
    %354 = vmatpush1.msra.mxu0 0.0
    %355 = vmatprep.subr.mxu0 0.0
    %356 = vmatpush1.msra.mxu0 0.0
    %357 = vmatprep.subr.mxu0 0.0
    %358 = vmatpush1.msra.mxu0 0.0
    %359 = vmatprep.subr.mxu0 0.0
    %360 = vmatpush1.msra.mxu0 0.0
    %361 = vmatprep.subr.mxu0 0.0
    %362 = vmatpush1.msra.mxu0 0.0
    %363 = vmatprep.subr.mxu0 0.0
    %364 = vmatpush1.msra.mxu0 0.0
    %365 = vmatprep.subr.mxu0 0.0
    %366 = vmatpush1.msra.mxu0 0.0
    %367 = vmatprep.mubr.f32.mxu0 0.0
    %368 = vmatmul.mubr.f32.gmra.mrb[0].mxu0 %v298
    %v369 = vpop.f32.mrb[0].mxu0
    %v370 = vadd.f32 %v302, %v369
    %v371 = vpop.f32.mrb[0].mxu0
    %372 = vdwg.mxu0
    %v373 = vmax.f32 %v370, 0.0
    %v374 = vlaneseq
    %v375 = vshrl.u32 %v374, 7
    %v376 = vsub.s32 4, %v375
    %v377 = vrot.slane %v141, %v376
    %378 = vmatprep.subr.mxu0 0.0
    %379 = vmatpush1.msra.mxu0 %v109
    %380 = vmatprep.subr.mxu0 0.0
    %381 = vmatpush1.msra.mxu0 %v110
    %382 = vmatprep.subr.mxu0 0.0
    %383 = vmatpush1.msra.mxu0 %v111
    %384 = vmatprep.subr.mxu0 0.0
    %385 = vmatpush1.msra.mxu0 %v112
    %386 = vmatprep.subr.mxu0 0.0
    %387 = vmatpush1.msra.mxu0 %v113
    %388 = vmatprep.subr.mxu0 0.0
    %389 = vmatpush1.msra.mxu0 %v114
    %390 = vmatprep.subr.mxu0 0.0
    %391 = vmatpush1.msra.mxu0 %v115
    %392 = vmatprep.subr.mxu0 0.0
    %393 = vmatpush1.msra.mxu0 %v116
    %394 = vmatprep.subr.mxu0 0.0
    %395 = vmatpush1.msra.mxu0 %v117
    %396 = vmatprep.subr.mxu0 0.0
    %397 = vmatpush1.msra.mxu0 %v118
    %398 = vmatprep.subr.mxu0 0.0
    %399 = vmatpush1.msra.mxu0 %v119
    %400 = vmatprep.subr.mxu0 0.0
    %401 = vmatpush1.msra.mxu0 %v120
    %402 = vmatprep.subr.mxu0 0.0
    %403 = vmatpush1.msra.mxu0 %v121
    %404 = vmatprep.subr.mxu0 0.0
    %405 = vmatpush1.msra.mxu0 %v122
    %406 = vmatprep.subr.mxu0 0.0
    %407 = vmatpush1.msra.mxu0 %v123
    %408 = vmatprep.subr.mxu0 0.0
    %409 = vmatpush1.msra.mxu0 %v124
    %410 = vmatprep.subr.mxu0 0.0
    %411 = vmatpush1.msra.mxu0 0.0
    %412 = vmatprep.subr.mxu0 0.0
    %413 = vmatpush1.msra.mxu0 0.0
    %414 = vmatprep.subr.mxu0 0.0
    %415 = vmatpush1.msra.mxu0 0.0
    %416 = vmatprep.subr.mxu0 0.0
    %417 = vmatpush1.msra.mxu0 0.0
    %418 = vmatprep.subr.mxu0 0.0
    %419 = vmatpush1.msra.mxu0 0.0
    %420 = vmatprep.subr.mxu0 0.0
    %421 = vmatpush1.msra.mxu0 0.0
    %422 = vmatprep.subr.mxu0 0.0
    %423 = vmatpush1.msra.mxu0 0.0
    %424 = vmatprep.subr.mxu0 0.0
    %425 = vmatpush1.msra.mxu0 0.0
    %426 = vmatprep.subr.mxu0 0.0
    %427 = vmatpush1.msra.mxu0 0.0
    %428 = vmatprep.subr.mxu0 0.0
    %429 = vmatpush1.msra.mxu0 0.0
    %430 = vmatprep.subr.mxu0 0.0
    %431 = vmatpush1.msra.mxu0 0.0
    %432 = vmatprep.subr.mxu0 0.0
    %433 = vmatpush1.msra.mxu0 0.0
    %434 = vmatprep.subr.mxu0 0.0
    %435 = vmatpush1.msra.mxu0 0.0
    %436 = vmatprep.subr.mxu0 0.0
    %437 = vmatpush1.msra.mxu0 0.0
    %438 = vmatprep.subr.mxu0 0.0
    %439 = vmatpush1.msra.mxu0 0.0
    %440 = vmatprep.subr.mxu0 0.0
    %441 = vmatpush1.msra.mxu0 0.0
    %442 = vmatprep.mubr.f32.mxu0 0.0
    %443 = vmatmul.mubr.f32.gmra.mrb[0].mxu0 %v373
    %v444 = vpop.f32.mrb[0].mxu0
    %v445 = vadd.f32 %v377, %v444
    %v446 = vpop.f32.mrb[0].mxu0
    %447 = vdwg.mxu0
    %v448 = vmax.f32 %v445, 0.0
    %v449 = vlaneseq
    %v450 = vshrl.u32 %v449, 7
    %v451 = vsub.s32 5, %v450
    %v452 = vrot.slane %v141, %v451
    %453 = vmatprep.subr.mxu0 0.0
    %454 = vmatpush1.msra.mxu0 %v125
    %455 = vmatprep.subr.mxu0 0.0
    %456 = vmatpush1.msra.mxu0 %v126
    %457 = vmatprep.subr.mxu0 0.0
    %458 = vmatpush1.msra.mxu0 %v127
    %459 = vmatprep.subr.mxu0 0.0
    %460 = vmatpush1.msra.mxu0 %v128
    %461 = vmatprep.subr.mxu0 0.0
    %462 = vmatpush1.msra.mxu0 %v129
    %463 = vmatprep.subr.mxu0 0.0
    %464 = vmatpush1.msra.mxu0 %v130
    %465 = vmatprep.subr.mxu0 0.0
    %466 = vmatpush1.msra.mxu0 %v131
    %467 = vmatprep.subr.mxu0 0.0
    %468 = vmatpush1.msra.mxu0 %v132
    %469 = vmatprep.subr.mxu0 0.0
    %470 = vmatpush1.msra.mxu0 %v133
    %471 = vmatprep.subr.mxu0 0.0
    %472 = vmatpush1.msra.mxu0 %v134
    %473 = vmatprep.subr.mxu0 0.0
    %474 = vmatpush1.msra.mxu0 %v135
    %475 = vmatprep.subr.mxu0 0.0
    %476 = vmatpush1.msra.mxu0 %v136
    %477 = vmatprep.subr.mxu0 0.0
    %478 = vmatpush1.msra.mxu0 %v137
    %479 = vmatprep.subr.mxu0 0.0
    %480 = vmatpush1.msra.mxu0 %v138
    %481 = vmatprep.subr.mxu0 0.0
    %482 = vmatpush1.msra.mxu0 %v139
    %483 = vmatprep.subr.mxu0 0.0
    %484 = vmatpush1.msra.mxu0 %v140
    %485 = vmatprep.subr.mxu0 0.0
    %486 = vmatpush1.msra.mxu0 0.0
    %487 = vmatprep.subr.mxu0 0.0
    %488 = vmatpush1.msra.mxu0 0.0
    %489 = vmatprep.subr.mxu0 0.0
    %490 = vmatpush1.msra.mxu0 0.0
    %491 = vmatprep.subr.mxu0 0.0
    %492 = vmatpush1.msra.mxu0 0.0
    %493 = vmatprep.subr.mxu0 0.0
    %494 = vmatpush1.msra.mxu0 0.0
    %495 = vmatprep.subr.mxu0 0.0
    %496 = vmatpush1.msra.mxu0 0.0
    %497 = vmatprep.subr.mxu0 0.0
    %498 = vmatpush1.msra.mxu0 0.0
    %499 = vmatprep.subr.mxu0 0.0
    %500 = vmatpush1.msra.mxu0 0.0
    %501 = vmatprep.subr.mxu0 0.0
    %502 = vmatpush1.msra.mxu0 0.0
    %503 = vmatprep.subr.mxu0 0.0
    %504 = vmatpush1.msra.mxu0 0.0
    %505 = vmatprep.subr.mxu0 0.0
    %506 = vmatpush1.msra.mxu0 0.0
    %507 = vmatprep.subr.mxu0 0.0
    %508 = vmatpush1.msra.mxu0 0.0
    %509 = vmatprep.subr.mxu0 0.0
    %510 = vmatpush1.msra.mxu0 0.0
    %511 = vmatprep.subr.mxu0 0.0
    %512 = vmatpush1.msra.mxu0 0.0
    %513 = vmatprep.subr.mxu0 0.0
    %514 = vmatpush1.msra.mxu0 0.0
    %515 = vmatprep.subr.mxu0 0.0
    %516 = vmatpush1.msra.mxu0 0.0
    %517 = vmatprep.mubr.f32.mxu0 0.0
    %518 = vmatmul.mubr.f32.gmra.mrb[0].mxu0 %v448
    %v519 = vpop.f32.mrb[0].mxu0
    %v520 = vadd.f32 %v452, %v519
    %v521 = vpop.f32.mrb[0].mxu0
    %522 = vdwg.mxu0
    %523 = vst [vmem:[%s3] sm:$0xff] %v520
    // Predicated region
    $region28: #{customer_onehot_dqn.1} parent=1 // pred_check
      _
    $region29: #{customer_onehot_dqn.1} parent=1 // pred_check_branch
      %525 = sbr.rel (0) target = $region31
    $region30: #{customer_onehot_dqn.1} parent=1 // pred_region
      _
    $region31: #{customer_onehot_dqn.1} parent=1 // pred_fallthru
      _
    // Predicated region
    $region32: #{customer_onehot_dqn.1} parent=1 // pred_check
      _
    $region33: #{customer_onehot_dqn.1} parent=1 // pred_check_branch
      %527 = sbr.rel (0) target = $region35
    $region34: #{customer_onehot_dqn.1} parent=1 // pred_region
      _
    $region35: #{customer_onehot_dqn.1} parent=1 // pred_fallthru
      _
    %528 = vsyncpa [#allocation7], 1
  %529 = vsyncmov [#allocation3]
  %s530 = vpop.sfrf %529
  %p531 = scmp.eq.s32.totalorder %s530, 0
  %p532 = pneg %p531
  %534 = shalt.err (%p532)

</llo_original>
